<compile_context>
chip_gen: v7x
topology: tpu7x:2x2x1
jax: 0.10.0
libtpu: 0.0.40
codegen_flags: <defaults>
</compile_context>

<pallas_src>
import jax
import jax.numpy as jnp
from jax.experimental import pallas as pl
from jax.experimental.pallas import tpu as pltpu


def _temporal_dropout_kernel(x_ref, scale_ref, out_ref):
    """x_ref / out_ref: (tr, HW); scale_ref: (tr, 1) f32 (keep / keep_prob)."""
    s = scale_ref[...].astype(x_ref.dtype)            # hoisted cast, native-dtype mul
    out_ref[...] = (x_ref[...] * s).astype(out_ref.dtype)


def temporal_dropout_block_3d(x, key, *, drop_prob, training=True,
                              target_block_bytes=2 * 1024 * 1024,
                              use_pallas=None):
    """Pallas forward of TemporalDropoutBlock3D. x: (B, C, T, H, W)."""
    assert x.ndim == 5, "Expected (B, C, T, H, W)"
    if (not training) or drop_prob == 0.0:
        return x
    if drop_prob >= 1.0:
        return jnp.zeros_like(x)

    B, C, T, H, W = x.shape
    HW = H * W
    rows = C * T
    keep_prob = 1.0 - drop_prob
    itemsize = x.dtype.itemsize

    # nn.Dropout3d on the permuted tensor drops whole (b, t) slabs across
    # (C, H, W): draw the (B, T) keep mask in plain JAX, fold in 1/(1-p).
    keep = jax.random.bernoulli(key, keep_prob, (B, T)).astype(jnp.float32)
    scale_bt = keep / jnp.float32(keep_prob)                         # (B, T)

    if use_pallas is None:
        # Tiny tensors: a fused XLA broadcast multiply is already at roofline.
        use_pallas = x.size * itemsize >= 4 * 1024 * 1024
    if not use_pallas:
        return (x * scale_bt.astype(x.dtype)[:, None, :, None, None]).astype(x.dtype)

    # Per-row scale for the flattened (B, C*T, HW) view: row index = c*T + t.
    scale_rows = jnp.broadcast_to(scale_bt[:, None, :], (B, C, T)).reshape(B, rows, 1)
    x_r = x.reshape(B, rows, HW)                       # contiguous -> free reshape

    # Row tile: multiple of the sublane packing, ~target_block_bytes per block.
    packing = max(8, 32 // itemsize)                   # 8 f32 / 16 bf16 / 32 int8
    bytes_per_row = max(1, HW * itemsize)
    if rows <= packing:
        tr = rows                                      # full extent (always legal)
    else:
        tr = min(rows, max(packing, target_block_bytes // bytes_per_row))
        tr = max(packing, (tr // packing) * packing)
        # Keep >= ~8 total grid steps so megacore sharding / double-buffering
        # has work on moderate-size inputs.
        while tr > packing and B * pl.cdiv(rows, tr) < 8:
            tr = max(packing, ((tr // 2) // packing) * packing)

    grid = (B, pl.cdiv(rows, tr))

    n = x.size
    cost = pl.CostEstimate(flops=n, transcendentals=0,
                           bytes_accessed=2 * n * itemsize + scale_rows.size * 4)

    out = pl.pallas_call(
        _temporal_dropout_kernel,
        out_shape=jax.ShapeDtypeStruct((B, rows, HW), x.dtype),
        grid=grid,
        in_specs=[
            pl.BlockSpec((pl.Squeezed(), tr, HW), lambda b, r: (b, r, 0)),
            pl.BlockSpec((pl.Squeezed(), tr, 1), lambda b, r: (b, r, 0)),
        ],
        out_specs=pl.BlockSpec((pl.Squeezed(), tr, HW), lambda b, r: (b, r, 0)),
        compiler_params=pltpu.CompilerParams(
            dimension_semantics=("parallel", "parallel"),
        ),
        cost_estimate=cost,
    )(x_r, scale_rows)

    return out.reshape(B, C, T, H, W)


if __name__ == "__main__":
    drop_prob = 0.3
    keep_prob = 1.0 - drop_prob
    B, C, T, H, W = 2, 4, 8, 16, 16

    root = jax.random.PRNGKey(0)
    kx, kmask = jax.random.split(root)
    x = jax.random.normal(kx, (B, C, T, H, W), dtype=jnp.float32)

    # Force the Pallas path (the size heuristic would route this tiny test
    # tensor to the XLA fallback).
    out = temporal_dropout_block_3d(x, kmask, drop_prob=drop_prob,
                                    training=True, use_pallas=True)
    out = jax.block_until_ready(out)

    # Pure-JAX reference with the identical mask draw.
    keep = jax.random.bernoulli(kmask, keep_prob, (B, T)).astype(jnp.float32)
    ref = x * (keep / keep_prob)[:, None, :, None, None]

    assert out.shape == x.shape and out.dtype == x.dtype
    assert jnp.allclose(out, ref, atol=1e-6, rtol=1e-6), "mismatch vs reference"

    # Awkward shape: prime-ish C, non-128-multiple H*W, partial row tile.
    # Correct (masked boundary blocks), exercising the cdiv grid path.
    B2, C2, T2, H2, W2 = 2, 3, 5, 4, 36
    kx2, kmask2 = jax.random.split(jax.random.PRNGKey(1))
    x2 = jax.random.normal(kx2, (B2, C2, T2, H2, W2), dtype=jnp.float32)
    out2 = jax.block_until_ready(
        temporal_dropout_block_3d(x2, kmask2, drop_prob=drop_prob,
                                  training=True, use_pallas=True))
    keep2 = jax.random.bernoulli(kmask2, keep_prob, (B2, T2)).astype(jnp.float32)
    ref2 = x2 * (keep2 / keep_prob)[:, None, :, None, None]
    assert jnp.allclose(out2, ref2, atol=1e-6, rtol=1e-6), "mismatch (awkward shape)"

    # Eval mode must be the identity; XLA fallback path must match too.
    out_eval = temporal_dropout_block_3d(x, kmask, drop_prob=drop_prob,
                                         training=False)
    assert jnp.array_equal(out_eval, x)
    out_fb = temporal_dropout_block_3d(x, kmask, drop_prob=drop_prob,
                                       training=True, use_pallas=False)
    assert jnp.allclose(out_fb, ref, atol=1e-6, rtol=1e-6)

    print("KERNEL_OK")
</pallas_src>

<mosaic_0001>
module attributes {stable_mosaic.version = 11 : i64} {
  func.func @_temporal_dropout_kernel(%arg0: i32, %arg1: i32, %arg2: memref<1x8x256xf32, #tpu.memory_space<vmem>>, %arg3: memref<1x8x1xf32, #tpu.memory_space<vmem>>, %arg4: memref<1x8x256xf32, #tpu.memory_space<vmem>>) attributes {dimension_semantics = [#tpu.dimension_semantics<parallel>, #tpu.dimension_semantics<parallel>], iteration_bounds = array<i64: 2, 4>, scalar_prefetch = 0 : i64, scratch_operands = 0 : i64, tpu.core_type = #tpu.core_type<tc>, window_params = [{transform_indices = @transform_0, window_bounds = array<i64: 1, 8, 256>}, {transform_indices = @transform_1, window_bounds = array<i64: 1, 8, 1>}, {transform_indices = @transform_2, window_bounds = array<i64: 1, 8, 256>}]} {
    %c0 = arith.constant 0 : index
    %c0_0 = arith.constant 0 : index
    %c0_1 = arith.constant 0 : index
    %0 = vector.load %arg3[%c0, %c0_0, %c0_1] : memref<1x8x1xf32, #tpu.memory_space<vmem>>, vector<1x8x1xf32>
    %1 = vector.shape_cast %0 : vector<1x8x1xf32> to vector<8x1xf32>
    %c0_2 = arith.constant 0 : index
    %c0_3 = arith.constant 0 : index
    %c0_4 = arith.constant 0 : index
    %2 = vector.load %arg2[%c0_2, %c0_3, %c0_4] : memref<1x8x256xf32, #tpu.memory_space<vmem>>, vector<1x8x256xf32>
    %3 = vector.shape_cast %2 : vector<1x8x256xf32> to vector<8x256xf32>
    %4 = vector.broadcast %1 : vector<8x1xf32> to vector<8x256xf32>
    %5 = arith.mulf %3, %4 : vector<8x256xf32>
    %c0_5 = arith.constant 0 : index
    %c0_6 = arith.constant 0 : index
    %c0_7 = arith.constant 0 : index
    %6 = vector.load %arg4[%c0_5, %c0_6, %c0_7] : memref<1x8x256xf32, #tpu.memory_space<vmem>>, vector<1x8x256xf32>
    %7 = vector.shape_cast %6 : vector<1x8x256xf32> to vector<8x256xf32>
    %8 = vector.shape_cast %5 : vector<8x256xf32> to vector<1x8x256xf32>
    tpu.vector_store %arg4[%c0_5, %c0_6, %c0_7], %8 {strides = array<i32>} : memref<1x8x256xf32, #tpu.memory_space<vmem>>, vector<1x8x256xf32>,
    return
  }
  func.func @transform_0(%arg0: i32, %arg1: i32) -> (i32, i32, i32) {
    %c0_i32 = arith.constant 0 : i32
    %c0_i32_0 = arith.constant 0 : i32
    return %arg0, %arg1, %c0_i32 : i32, i32, i32
  }
  func.func @transform_1(%arg0: i32, %arg1: i32) -> (i32, i32, i32) {
    %c0_i32 = arith.constant 0 : i32
    %c0_i32_0 = arith.constant 0 : i32
    return %arg0, %arg1, %c0_i32 : i32, i32, i32
  }
  func.func @transform_2(%arg0: i32, %arg1: i32) -> (i32, i32, i32) {
    %c0_i32 = arith.constant 0 : i32
    %c0_i32_0 = arith.constant 0 : i32
    return %arg0, %arg1, %c0_i32 : i32, i32, i32
  }
}

</mosaic_0001>

<llo_original>
// kernel: tpu_custom_call.1
$region0: #{tpu_custom_call.1}
  #allocation0 [shape = 'u32[]', space=smem, size = 0x4, offset = 0x4, fixed_abs, tag = 'smem constant byte address 0x4 - core index']
  #allocation1 [shape = 'u32[144,128]{1,0:T(1,128)}', space=vmem, size = 0x12000, scoped, tag = 'internal scratch']
  %s0 = inlined_call_operand.hbm [shape: f32[2,32,256], index: 0, kind: input, shape index: {}]
  %s1 = inlined_call_operand.vmem [shape: f32[2,32,1], index: 1, kind: input, shape index: {}]
  %s2 = inlined_call_operand.hbm [shape: f32[2,32,256], index: 2, kind: output, shape index: {}]
  %s3 = sld [smem:[#allocation0]]
  $region45: #{tpu_custom_call.1} parent=0
    _
  %s5 = ssub.s32 1, %s3
  %s6 = scalar_select 0, %s5, %s3
  $region1: #{tpu_custom_call.1} parent=0
    #allocation2 [shape = 'u8[16384]{0}', space=vmem, size = 0x4000, scoped, tag = 'input window, operand 0']
    #allocation3 [shape = 's32[2]{0}', space=sflag, size = 0x8, scoped, tag = 'scoped memory for tpu_custom_call.1']
    #allocation4 [shape = 's32[2]{0}', space=sflag, size = 0x8, scoped, tag = 'scoped memory for tpu_custom_call.1']
    #allocation5 [shape = 'u8[16384]{0}', space=vmem, size = 0x4000, scoped, tag = 'output window, operand 0']
    %7 = vsyncpa [#allocation3], 0
    %s8 = scalar_lea.sflag [#allocation3], 1
    %9 = vsyncpa %s8, 0
    %10 = vsyncpa [#allocation4], 0
    %s11 = scalar_lea.sflag [#allocation4], 1
    %12 = vsyncpa %s11, 0
    loop: start=0, step=1, limit=10
    $region2: #{tpu_custom_call.1} parent=1 // loop_pre_header
      _
    $region3: #{tpu_custom_call.1} parent=1 // loop_header
      %s14 = sphi 0, %s18
      %p15 = scmp.ge.s32.totalorder %s14, 10
      %s21 = sphi 0, %s33
      %s22 = sphi 0, %s29
      %s23 = sphi 0, %s21
      %s24 = sphi 0, %s22
      %s25 = sphi 0, %s23
      %s26 = sphi 0, %s24
      %s38 = sphi 0, %s40
      %s41 = sphi 0, %s38
      %s42 = sphi 0, %s41
      %s58 = sphi 0, %s42
      %s66 = sphi 0, %s68
      %s69 = sphi 0, %s66
      %s70 = sphi 0, %s69
      %s86 = sphi 0, %s70
      %s94 = sphi 0, %s96
      %s97 = sphi 0, %s94
      %s98 = sphi 0, %s97
      %s114 = sphi 0, %s98
    $region4: #{tpu_custom_call.1} parent=1 // loop_header_branch
      %17 = sbr.rel (%p15) target = $region8
    $region5: #{tpu_custom_call.1} parent=1 // loop_body
      %s19 = ssub.s32 %s14, 1
      %s20 = ssub.s32 %s14, 2
      %s27 = sadd.s32 1, %s22
      %p28 = scmp.ge.s32.totalorder %s27, 4
      %s29 = scalar_select %p28, 0, %s27
      %s30 = sadd.s32 1, %s21
      %s31 = scalar_select %p28, %s30, %s21
      %p32 = scmp.ge.s32.totalorder %s31, 2
      %s33 = scalar_select %p32, 0, %s31
      %s34 = ssub.s32 %s21, %s33
      %s35 = ssub.s32 %s22, %s29
      %s36 = sor.u32 %s34, %s35
      %p37 = scmp.eq.s32.totalorder %s36, 0
      %s39 = sadd.s32 %s38, 1
      %s40 = scalar_select %p37, %s38, %s39
      %p43 = pneg %p37
      %p44 = scmp.eq.s32.totalorder %s14, 7
      %p45 = por %p43, %p44
      %p46 = scmp.ne.s32.totalorder %s38, %s41
      %p47 = scmp.eq.s32.totalorder %s14, 0
      %p48 = por %p46, %p47
      %p49 = scmp.ne.s32.totalorder %s38, %s41
      %p50 = scmp.eq.s32.totalorder %s19, 7
      %p51 = por %p49, %p50
      %p52 = scmp.ne.s32.totalorder %s41, %s42
      %p53 = scmp.eq.s32.totalorder %s19, 0
      %p54 = por %p52, %p53
      %p55 = scmp.ne.s32.totalorder %s41, %s42
      %p56 = scmp.eq.s32.totalorder %s20, 7
      %p57 = por %p55, %p56
      %p59 = scmp.ne.s32.totalorder %s42, %s58
      %p60 = scmp.eq.s32.totalorder %s20, 0
      %p61 = por %p59, %p60
      %s62 = ssub.s32 %s21, %s33
      %s63 = ssub.s32 %s22, %s29
      %s64 = sor.u32 %s62, %s63
      %p65 = scmp.eq.s32.totalorder %s64, 0
      %s67 = sadd.s32 %s66, 1
      %s68 = scalar_select %p65, %s66, %s67
      %p71 = pneg %p65
      %p72 = scmp.eq.s32.totalorder %s14, 7
      %p73 = por %p71, %p72
      %p74 = scmp.ne.s32.totalorder %s66, %s69
      %p75 = scmp.eq.s32.totalorder %s14, 0
      %p76 = por %p74, %p75
      %p77 = scmp.ne.s32.totalorder %s66, %s69
      %p78 = scmp.eq.s32.totalorder %s19, 7
      %p79 = por %p77, %p78
      %p80 = scmp.ne.s32.totalorder %s69, %s70
      %p81 = scmp.eq.s32.totalorder %s19, 0
      %p82 = por %p80, %p81
      %p83 = scmp.ne.s32.totalorder %s69, %s70
      %p84 = scmp.eq.s32.totalorder %s20, 7
      %p85 = por %p83, %p84
      %p87 = scmp.ne.s32.totalorder %s70, %s86
      %p88 = scmp.eq.s32.totalorder %s20, 0
      %p89 = por %p87, %p88
      %s90 = ssub.s32 %s21, %s33
      %s91 = ssub.s32 %s22, %s29
      %s92 = sor.u32 %s90, %s91
      %p93 = scmp.eq.s32.totalorder %s92, 0
      %s95 = sadd.s32 %s94, 1
      %s96 = scalar_select %p93, %s94, %s95
      %p99 = pneg %p93
      %p100 = scmp.eq.s32.totalorder %s14, 7
      %p101 = por %p99, %p100
      %p102 = scmp.ne.s32.totalorder %s94, %s97
      %p103 = scmp.eq.s32.totalorder %s14, 0
      %p104 = por %p102, %p103
      %p105 = scmp.ne.s32.totalorder %s94, %s97
      %p106 = scmp.eq.s32.totalorder %s19, 7
      %p107 = por %p105, %p106
      %p108 = scmp.ne.s32.totalorder %s97, %s98
      %p109 = scmp.eq.s32.totalorder %s19, 0
      %p110 = por %p108, %p109
      %p111 = scmp.ne.s32.totalorder %s97, %s98
      %p112 = scmp.eq.s32.totalorder %s20, 7
      %p113 = por %p111, %p112
      %p115 = scmp.ne.s32.totalorder %s98, %s114
      %p116 = scmp.eq.s32.totalorder %s20, 0
      %p117 = por %p115, %p116
      %p118 = scmp.le.s32.totalorder 1, %s14
      %p119 = scmp.lt.s32.totalorder %s14, 9
      %p120 = pnand %p118, %p119
      %p121 = pneg %p120
      // Predicated region
      $region9: #{tpu_custom_call.1} parent=5 // pred_check
        _
      $region10: #{tpu_custom_call.1} parent=5 // pred_check_branch
        %123 = sbr.rel (%p120) target = $region12
      $region11: #{tpu_custom_call.1} parent=5 // pred_region
        %s124 = ssub.s32 %s14, 1
      $region12: #{tpu_custom_call.1} parent=5 // pred_fallthru
        _
      %p125 = scmp.lt.s32.totalorder %s14, 8
      // Predicated region
      $region13: #{tpu_custom_call.1} parent=5 // pred_check
        %p126 = pneg %p125
      $region14: #{tpu_custom_call.1} parent=5 // pred_check_branch
        %128 = sbr.rel (%p126) target = $region16
      $region15: #{tpu_custom_call.1} parent=5 // pred_region
        // Predicated region
        $region17: #{tpu_custom_call.1} parent=15 // pred_check
          %p129 = pneg %p48
        $region18: #{tpu_custom_call.1} parent=15 // pred_check_branch
          %131 = sbr.rel (%p129) target = $region20
        $region19: #{tpu_custom_call.1} parent=15 // pred_region
          %s132 = sand.u32 %s38, 1
          %s133 = scalar_lea.sflag [#allocation3], %s132
          %s134 = sand.u32 %s38, 1
          %s135 = smul.addr %s134, 16
          %s136 = scalar_lea.vmem [#allocation2], %s135
          %s138 = ssub.s32 256, 256
          %139 = vsyncadd %s133, %s138
          %s140 = smul.addr %s22, 2
          %s141 = smul.addr %s21, 8
          %s142 = sadd.s32 %s140, %s141
          %s143 = smul.addr %s142, 128
          %s144 = scalar_lea.hbm %s0, %s143
          %s146 = sshll.u32 %s136, 4
          %s147 = int_to_ptr.vmem [resolvable:$true] %s146
          %149 = dma.hbm_to_vmem [thread:$0]  %s144, 256, %s147, %s133
        $region20: #{tpu_custom_call.1} parent=15 // pred_fallthru
          _
        // Predicated region
        $region21: #{tpu_custom_call.1} parent=15 // pred_check
          %p150 = pneg %p76
        $region22: #{tpu_custom_call.1} parent=15 // pred_check_branch
          %152 = sbr.rel (%p150) target = $region24
        $region23: #{tpu_custom_call.1} parent=15 // pred_region
          %p153 = scmp.lt.s32.totalorder %s21, 1
          %s154 = scalar_select %p153, %s21, 1
          %p155 = scmp.lt.s32.totalorder %s22, 3
          %s156 = scalar_select %p155, %s22, 3
          %s157 = smul.addr %s154, 4
          %s158 = sadd.s32 %s156, %s157
          %s159 = smul.addr %s158, 8
          %s160 = scalar_lea.vmem %s1, %s159
        $region24: #{tpu_custom_call.1} parent=15 // pred_fallthru
          _
      $region16: #{tpu_custom_call.1} parent=5 // pred_fallthru
        _
      %p161 = scmp.le.s32.totalorder 1, %s14
      %p162 = scmp.lt.s32.totalorder %s14, 9
      %p163 = pnand %p161, %p162
      %p164 = pneg %p163
      // Predicated region
      $region25: #{tpu_custom_call.1} parent=5 // pred_check
        _
      $region26: #{tpu_custom_call.1} parent=5 // pred_check_branch
        %166 = sbr.rel (%p163) target = $region28
      $region27: #{tpu_custom_call.1} parent=5 // pred_region
        %s167 = ssub.s32 %s14, 1
        %s168 = sand.u32 %s41, 1
        %s169 = scalar_lea.sflag [#allocation3], %s168
        %s170 = sand.u32 %s41, 1
        %s171 = smul.addr %s170, 16
        %s172 = scalar_lea.vmem [#allocation2], %s171
        // Predicated region
        $region29: #{tpu_custom_call.1} parent=27 // pred_check
          %p173 = pneg %p54
        $region30: #{tpu_custom_call.1} parent=27 // pred_check_branch
          %175 = sbr.rel (%p173) target = $region32
        $region31: #{tpu_custom_call.1} parent=27 // pred_region
          %176 = dma.done %s169, 256
        $region32: #{tpu_custom_call.1} parent=27 // pred_fallthru
          _
        %s177 = sand.u32 %s41, 1
        %s178 = scalar_lea.sflag [#allocation3], %s177
        %s179 = sand.u32 %s41, 1
        %s180 = smul.addr %s179, 16
        %s181 = scalar_lea.vmem [#allocation2], %s180
        %p182 = pneg %p54
        %p183 = pneg %p51
        %p184 = scmp.lt.s32.totalorder %s23, 1
        %s185 = scalar_select %p184, %s23, 1
        %p186 = scmp.lt.s32.totalorder %s24, 3
        %s187 = scalar_select %p186, %s24, 3
        %s188 = smul.addr %s185, 4
        %s189 = sadd.s32 %s187, %s188
        %s190 = smul.addr %s189, 8
        %s191 = scalar_lea.vmem %s1, %s190
        %p192 = pneg %p82
        %p193 = pneg %p79
        %p194 = pneg %p110
        %p195 = pneg %p107
        %s196 = sand.u32 %s97, 1
        %s197 = scalar_lea.sflag [#allocation4], %s196
        %s198 = sand.u32 %s97, 1
        %s199 = smul.addr %s198, 16
        %s200 = scalar_lea.vmem [#allocation5], %s199
        %p201 = scmp.lt.s32.totalorder %s23, 1
        %s202 = scalar_select %p201, %s23, 1
        %p203 = scmp.lt.s32.totalorder %s24, 3
        %s204 = scalar_select %p203, %s24, 3
        %s205 = smul.addr %s202, 4
        %s206 = sadd.s32 %s204, %s205
        %s207 = smul.addr %s206, 8
        %s208 = scalar_lea.vmem %s1, %s207
        %v209 = vld [vmem:[%s208] sm:$0xff]
        %v210 = vld [vmem:[%s172] sm:$0xff]
        %v211 = vld [vmem:[%s172 + $0x8] sm:$0xff]
        %213 = vset.pattern.permute.xlu0 0
        %214 = vperm.xlu0 %213, %v209
        %v215 = vpop.permute.xlu0 %214
        %v217 = vmul.f32 %v210, %v215
        %v218 = vmul.f32 %v211, %v215
        %219 = vst [vmem:[%s200] sm:$0xff] %v217
        %220 = vst [vmem:[%s200 + $0x8] sm:$0xff] %v218
        %s221 = sand.u32 %s97, 1
        %s222 = scalar_lea.sflag [#allocation4], %s221
        %s223 = sand.u32 %s97, 1
        %s224 = smul.addr %s223, 16
        %s225 = scalar_lea.vmem [#allocation5], %s224
        // Predicated region
        $region33: #{tpu_custom_call.1} parent=27 // pred_check
          %p226 = pneg %p107
        $region34: #{tpu_custom_call.1} parent=27 // pred_check_branch
          %228 = sbr.rel (%p226) target = $region36
        $region35: #{tpu_custom_call.1} parent=27 // pred_region
          %s230 = ssub.s32 256, 256
          %231 = vsyncadd %s222, %s230
          %s232 = smul.addr %s24, 2
          %s233 = smul.addr %s23, 8
          %s234 = sadd.s32 %s232, %s233
          %s235 = smul.addr %s234, 128
          %s236 = scalar_lea.hbm %s2, %s235
          %s238 = sshll.u32 %s225, 4
          %s239 = int_to_ptr.vmem [resolvable:$true] %s238
          %241 = dma.vmem_to_hbm [thread:$0]  %s239, 256, %s236, %s222
        $region36: #{tpu_custom_call.1} parent=27 // pred_fallthru
          _
      $region28: #{tpu_custom_call.1} parent=5 // pred_fallthru
        _
      %p242 = scmp.le.s32.totalorder 2, %s14
      // Predicated region
      $region37: #{tpu_custom_call.1} parent=5 // pred_check
        %p243 = pneg %p242
      $region38: #{tpu_custom_call.1} parent=5 // pred_check_branch
        %245 = sbr.rel (%p243) target = $region40
      $region39: #{tpu_custom_call.1} parent=5 // pred_region
        %s246 = ssub.s32 %s14, 2
        // Predicated region
        $region41: #{tpu_custom_call.1} parent=39 // pred_check
          %p247 = pneg %p113
        $region42: #{tpu_custom_call.1} parent=39 // pred_check_branch
          %249 = sbr.rel (%p247) target = $region44
        $region43: #{tpu_custom_call.1} parent=39 // pred_region
          %s250 = sand.u32 %s98, 1
          %s251 = scalar_lea.sflag [#allocation4], %s250
          %s252 = sand.u32 %s98, 1
          %s253 = smul.addr %s252, 16
          %s254 = scalar_lea.vmem [#allocation5], %s253
          %255 = dma.done %s251, 256
        $region44: #{tpu_custom_call.1} parent=39 // pred_fallthru
          _
      $region40: #{tpu_custom_call.1} parent=5 // pred_fallthru
        _
    $region6: #{tpu_custom_call.1} parent=1 // loop_footer
      %s18 = sadd.s32 1, %s14
    $region7: #{tpu_custom_call.1} parent=1 // loop_footer_branch
      %13 = sbr.rel target = $region3
    $region8: #{tpu_custom_call.1} parent=1 // loop_exit
      _
    %256 = vsyncpa [#allocation3], 1
    %s257 = scalar_lea.sflag [#allocation3], 1
    %258 = vsyncpa %s257, 1
    %259 = vsyncpa [#allocation4], 1
    %s260 = scalar_lea.sflag [#allocation4], 1
    %261 = vsyncpa %s260, 1

</llo_original>
